<compile_context>
chip_gen: v7x
topology: tpu7x:2x2x1
jax: 0.10.0
libtpu: 0.0.40
codegen_flags: <defaults>
</compile_context>

<pallas_src>
import numpy as np
import jax
import jax.numpy as jnp
from jax.experimental import pallas as pl
from jax.experimental.pallas import tpu as pltpu

LANES = 128


# ----------------------------------------------------------------------------
# Pallas kernel: embedding row fetch + fused GRU cell (PyTorch gate order
# r, z, n) + fc layer, packed lane-dense output.
# ----------------------------------------------------------------------------
def gru_fused_kernel(tok_ref,        # SMEM (1,) int32 token id
                     emb_ref,        # VMEM (V, E) embedding table
                     h0_ref,         # VMEM (1, H) previous hidden state
                     w_g_ref,        # VMEM (E+H, 3H): rows 0:E = W_ih^T, E:E+H = W_hh^T
                     b_ref,          # VMEM (3, 128): row0=b_ih, row1=b_hh, row2=b_fc (padded)
                     w_fc_ref,       # VMEM (H, 128-H): cols 0:O = W_fc^T, rest zero
                     out_ref):       # VMEM (1, 128): [h_new | logits_pad]
    E = emb_ref.shape[1]
    H = h0_ref.shape[1]
    G = 3 * H
    FC_PAD = w_fc_ref.shape[1]

    tok = tok_ref[0]
    e = emb_ref[pl.ds(tok, 1), :]                       # (1, E) in-kernel gather
    h = h0_ref[...]                                     # (1, H)

    # Fused projections: one MXU push each instead of three per side.
    gi = (jnp.dot(e, w_g_ref[0:E, :], preferred_element_type=jnp.float32)
          + b_ref[0:1, 0:G])                            # (1, 3H) = [r | z | n]
    gh = (jnp.dot(h, w_g_ref[E:E + H, :], preferred_element_type=jnp.float32)
          + b_ref[1:2, 0:G])                            # (1, 3H)

    r = jax.nn.sigmoid(gi[:, 0:H] + gh[:, 0:H])
    z = jax.nn.sigmoid(gi[:, H:2 * H] + gh[:, H:2 * H])
    n = jnp.tanh(gi[:, 2 * H:G] + r * gh[:, 2 * H:G])
    h_new = (1.0 - z) * n + z * h                       # (1, H)

    logits_pad = (jnp.dot(h_new, w_fc_ref[...], preferred_element_type=jnp.float32)
                  + b_ref[2:3, 0:FC_PAD])               # (1, 128-H); real logits in lanes 0:O

    # Lane-dense packed output: all 128 lanes written -> one dense writeback DMA.
    out_ref[:, 0:H] = h_new
    out_ref[:, H:H + FC_PAD] = logits_pad


# ----------------------------------------------------------------------------
# One-time weight packing + jitted forward (weights are NOT re-packed per call).
# ----------------------------------------------------------------------------
def make_gru_forward(params):
    H = params["w_hh"].shape[1]
    E = params["w_ih"].shape[1]
    O = params["w_fc"].shape[0]
    assert 3 * H <= LANES, "bias-slab packing assumes 3*H <= 128"
    assert H + O <= LANES, "packed output assumes H + O <= 128"
    FC_PAD = LANES - H

    # --- hoisted, one-time packing -------------------------------------------
    # PyTorch GRU weight layout: rows [0:H]=r, [H:2H]=z, [2H:3H]=n.
    w_g = jnp.concatenate([params["w_ih"].T, params["w_hh"].T], axis=0)   # (E+H, 3H)
    b = jnp.zeros((3, LANES), jnp.float32)
    b = b.at[0, :3 * H].set(params["b_ih"])
    b = b.at[1, :3 * H].set(params["b_hh"])
    b = b.at[2, :O].set(params["b_fc"])
    w_fc = jnp.zeros((H, FC_PAD), jnp.float32).at[:, :O].set(params["w_fc"].T)
    emb = params["embedding"].astype(jnp.float32)

    vmem = pl.BlockSpec(memory_space=pltpu.MemorySpace.VMEM)
    smem = pl.BlockSpec(memory_space=pltpu.MemorySpace.SMEM)

    step = pl.pallas_call(
        gru_fused_kernel,
        out_shape=jax.ShapeDtypeStruct((1, LANES), jnp.float32),
        in_specs=[smem, vmem, vmem, vmem, vmem, vmem],
        out_specs=vmem,
    )

    @jax.jit
    def forward(x, h_n=None):
        # x: (seq_len=1, batch=1) int32 token ids.
        batch = x.shape[1]
        if h_n is None:
            h_0 = jnp.zeros((1, batch, H), jnp.float32)    # init_hidden
        else:
            h_0 = h_n
        tok = x.reshape(-1)[:1].astype(jnp.int32)          # (1,) token id -> SMEM
        packed = step(tok, emb, h_0[0], w_g, b, w_fc)      # (1, 128)
        h_new = packed[:, :H]                              # (1, H)
        logits = packed[:, H:H + O]                        # (1, O)
        return logits, h_new.reshape(1, batch, H)

    return forward


# ----------------------------------------------------------------------------
# Pure-JAX reference (same math, no Pallas) for correctness checks.
# ----------------------------------------------------------------------------
def ref_forward(x, params, h_n=None):
    H = params["w_hh"].shape[1]
    tok = x.reshape(-1)[0]
    e = params["embedding"][tok].reshape(1, -1)
    h = jnp.zeros((1, H), jnp.float32) if h_n is None else h_n[0]
    gi = e @ params["w_ih"].T + params["b_ih"]
    gh = h @ params["w_hh"].T + params["b_hh"]
    r = jax.nn.sigmoid(gi[:, 0:H] + gh[:, 0:H])
    z = jax.nn.sigmoid(gi[:, H:2 * H] + gh[:, H:2 * H])
    n = jnp.tanh(gi[:, 2 * H:] + r * gh[:, 2 * H:])
    h_new = (1.0 - z) * n + z * h
    logits = h_new @ params["w_fc"].T + params["b_fc"]
    return logits, h_new.reshape(1, 1, H)


def init_params(key, vocab, E, H, O):
    ks = jax.random.split(key, 7)
    s = 1.0 / np.sqrt(H)
    return {
        "embedding": jax.random.normal(ks[0], (vocab, E), jnp.float32),
        "w_ih": jax.random.uniform(ks[1], (3 * H, E), jnp.float32, -s, s),
        "w_hh": jax.random.uniform(ks[2], (3 * H, H), jnp.float32, -s, s),
        "b_ih": jax.random.uniform(ks[3], (3 * H,), jnp.float32, -s, s),
        "b_hh": jax.random.uniform(ks[4], (3 * H,), jnp.float32, -s, s),
        "w_fc": jax.random.uniform(ks[5], (O, H), jnp.float32, -s, s),
        "b_fc": jax.random.uniform(ks[6], (O,), jnp.float32, -s, s),
    }


if __name__ == "__main__":
    V, E, H, O = 100, 32, 32, 4           # vocab, embedding, hidden, output
    params = init_params(jax.random.PRNGKey(0), V, E, H, O)
    forward = make_gru_forward(params)

    # Step 1: fresh hidden state.
    x = jnp.array([[7]], dtype=jnp.int32)                 # (seq=1, batch=1)
    logits, h_n = forward(x)
    logits = jax.block_until_ready(logits)
    h_n = jax.block_until_ready(h_n)
    ref_logits, ref_hn = ref_forward(x, params)
    assert logits.shape == (1, O) and h_n.shape == (1, 1, H)
    assert np.allclose(np.asarray(logits), np.asarray(ref_logits), rtol=1e-4, atol=1e-4)
    assert np.allclose(np.asarray(h_n), np.asarray(ref_hn), rtol=1e-4, atol=1e-4)

    # Step 2: feed the hidden state back (exercises the h_n != None path).
    x2 = jnp.array([[42]], dtype=jnp.int32)
    logits2, h_n2 = forward(x2, h_n)
    logits2 = jax.block_until_ready(logits2)
    h_n2 = jax.block_until_ready(h_n2)
    ref_logits2, ref_hn2 = ref_forward(x2, params, ref_hn)
    assert np.allclose(np.asarray(logits2), np.asarray(ref_logits2), rtol=1e-4, atol=1e-4)
    assert np.allclose(np.asarray(h_n2), np.asarray(ref_hn2), rtol=1e-4, atol=1e-4)

    print("KERNEL_OK")
</pallas_src>

<mosaic_0001>
module attributes {stable_mosaic.version = 11 : i64} {
  func.func @gru_fused_kernel(%arg0: memref<1xi32, #tpu.memory_space<smem>>, %arg1: memref<100x32xf32, #tpu.memory_space<vmem>>, %arg2: memref<1x32xf32, #tpu.memory_space<vmem>>, %arg3: memref<64x96xf32, #tpu.memory_space<vmem>>, %arg4: memref<3x128xf32, #tpu.memory_space<vmem>>, %arg5: memref<32x96xf32, #tpu.memory_space<vmem>>, %arg6: memref<1x128xf32, #tpu.memory_space<vmem>>) attributes {dimension_semantics = [], scalar_prefetch = 0 : i64, scratch_operands = 0 : i64, tpu.core_type = #tpu.core_type<tc>} {
    %c0 = arith.constant 0 : index
    %0 = memref.load %arg0[%c0] : memref<1xi32, #tpu.memory_space<smem>>
    %1 = arith.index_cast %0 : i32 to index
    %c0_0 = arith.constant 0 : index
    %2 = vector.load %arg1[%1, %c0_0] : memref<100x32xf32, #tpu.memory_space<vmem>>, vector<1x32xf32>
    %c0_1 = arith.constant 0 : index
    %c0_2 = arith.constant 0 : index
    %3 = vector.load %arg2[%c0_1, %c0_2] : memref<1x32xf32, #tpu.memory_space<vmem>>, vector<1x32xf32>
    %c0_3 = arith.constant 0 : index
    %c0_4 = arith.constant 0 : index
    %4 = vector.load %arg3[%c0_3, %c0_4] : memref<64x96xf32, #tpu.memory_space<vmem>>, vector<32x96xf32>
    %cst = arith.constant dense<0.000000e+00> : vector<1x96xf32>
    %5 = tpu.matmul %2, %4, %cst {dimension_numbers = #tpu.dot_dimension_numbers<[1], [0], [0], [1], [0, 0, 1, 1], [], []>} : vector<1x32xf32>, vector<32x96xf32>, vector<1x96xf32> -> vector<1x96xf32>
    %c0_5 = arith.constant 0 : index
    %c0_6 = arith.constant 0 : index
    %6 = vector.load %arg4[%c0_5, %c0_6] : memref<3x128xf32, #tpu.memory_space<vmem>>, vector<1x96xf32>
    %7 = arith.addf %5, %6 : vector<1x96xf32>
    %c32 = arith.constant 32 : index
    %c0_7 = arith.constant 0 : index
    %8 = vector.load %arg3[%c32, %c0_7] : memref<64x96xf32, #tpu.memory_space<vmem>>, vector<32x96xf32>
    %cst_8 = arith.constant dense<0.000000e+00> : vector<1x96xf32>
    %9 = tpu.matmul %3, %8, %cst_8 {dimension_numbers = #tpu.dot_dimension_numbers<[1], [0], [0], [1], [0, 0, 1, 1], [], []>} : vector<1x32xf32>, vector<32x96xf32>, vector<1x96xf32> -> vector<1x96xf32>
    %c1 = arith.constant 1 : index
    %c0_9 = arith.constant 0 : index
    %10 = vector.load %arg4[%c1, %c0_9] : memref<3x128xf32, #tpu.memory_space<vmem>>, vector<1x96xf32>
    %11 = arith.addf %9, %10 : vector<1x96xf32>
    %12 = vector.extract_strided_slice %7 {offsets = [0, 0], sizes = [1, 32], strides = [1, 1]} : vector<1x96xf32> to vector<1x32xf32>
    %13 = vector.extract_strided_slice %11 {offsets = [0, 0], sizes = [1, 32], strides = [1, 1]} : vector<1x96xf32> to vector<1x32xf32>
    %14 = arith.addf %12, %13 : vector<1x32xf32>
    %15 = arith.negf %14 : vector<1x32xf32>
    %16 = math.exp %15 : vector<1x32xf32>
    %cst_10 = arith.constant 1.000000e+00 : f32
    %17 = vector.broadcast %cst_10 : f32 to vector<1x32xf32>
    %18 = arith.addf %17, %16 : vector<1x32xf32>
    %19 = arith.divf %17, %18 : vector<1x32xf32>
    %20 = vector.extract_strided_slice %7 {offsets = [0, 32], sizes = [1, 32], strides = [1, 1]} : vector<1x96xf32> to vector<1x32xf32>
    %21 = vector.extract_strided_slice %11 {offsets = [0, 32], sizes = [1, 32], strides = [1, 1]} : vector<1x96xf32> to vector<1x32xf32>
    %22 = arith.addf %20, %21 : vector<1x32xf32>
    %23 = arith.negf %22 : vector<1x32xf32>
    %24 = math.exp %23 : vector<1x32xf32>
    %cst_11 = arith.constant 1.000000e+00 : f32
    %25 = vector.broadcast %cst_11 : f32 to vector<1x32xf32>
    %26 = arith.addf %25, %24 : vector<1x32xf32>
    %27 = arith.divf %25, %26 : vector<1x32xf32>
    %28 = vector.extract_strided_slice %7 {offsets = [0, 64], sizes = [1, 32], strides = [1, 1]} : vector<1x96xf32> to vector<1x32xf32>
    %29 = vector.extract_strided_slice %11 {offsets = [0, 64], sizes = [1, 32], strides = [1, 1]} : vector<1x96xf32> to vector<1x32xf32>
    %30 = arith.mulf %19, %29 : vector<1x32xf32>
    %31 = arith.addf %28, %30 : vector<1x32xf32>
    %32 = math.tanh %31 : vector<1x32xf32>
    %cst_12 = arith.constant 1.000000e+00 : f32
    %33 = vector.broadcast %cst_12 : f32 to vector<1x32xf32>
    %34 = arith.subf %33, %27 : vector<1x32xf32>
    %35 = arith.mulf %34, %32 : vector<1x32xf32>
    %36 = arith.mulf %27, %3 : vector<1x32xf32>
    %37 = arith.addf %35, %36 : vector<1x32xf32>
    %c0_13 = arith.constant 0 : index
    %c0_14 = arith.constant 0 : index
    %38 = vector.load %arg5[%c0_13, %c0_14] : memref<32x96xf32, #tpu.memory_space<vmem>>, vector<32x96xf32>
    %cst_15 = arith.constant dense<0.000000e+00> : vector<1x96xf32>
    %39 = tpu.matmul %37, %38, %cst_15 {dimension_numbers = #tpu.dot_dimension_numbers<[1], [0], [0], [1], [0, 0, 1, 1], [], []>} : vector<1x32xf32>, vector<32x96xf32>, vector<1x96xf32> -> vector<1x96xf32>
    %c2 = arith.constant 2 : index
    %c0_16 = arith.constant 0 : index
    %40 = vector.load %arg4[%c2, %c0_16] : memref<3x128xf32, #tpu.memory_space<vmem>>, vector<1x96xf32>
    %41 = arith.addf %39, %40 : vector<1x96xf32>
    %c0_17 = arith.constant 0 : index
    %c0_18 = arith.constant 0 : index
    %42 = vector.load %arg6[%c0_17, %c0_18] : memref<1x128xf32, #tpu.memory_space<vmem>>, vector<1x32xf32>
    tpu.vector_store %arg6[%c0_17, %c0_18], %37 {strides = array<i32>} : memref<1x128xf32, #tpu.memory_space<vmem>>, vector<1x32xf32>,
    %c0_19 = arith.constant 0 : index
    %c32_20 = arith.constant 32 : index
    %43 = vector.load %arg6[%c0_19, %c32_20] : memref<1x128xf32, #tpu.memory_space<vmem>>, vector<1x96xf32>
    tpu.vector_store %arg6[%c0_19, %c32_20], %41 {strides = array<i32>} : memref<1x128xf32, #tpu.memory_space<vmem>>, vector<1x96xf32>,
    return
  }
}

</mosaic_0001>

<llo_original>
// kernel: squeeze.1
$region0: #{squeeze.1}
  #allocation0 [shape = 's32[1]{0}', space=sflag, size = 0x4, scoped, tag = 'scoped memory for squeeze.1']
  %s0 = inlined_call_operand.<no memory space> [shape: f32[], index: 0, kind: input, shape index: {}]
  %s1 = inlined_call_operand.vmem [shape: f32[1,32], index: 1, kind: output, shape index: {}]
  %v2 = vstv %s0
  %3 = vst [vmem:[%s1] sm:$0x1] %v2

// kernel: forward.1
$region0: #{forward.1}
  #allocation0 [shape = 'u32[]', space=smem, size = 0x4, offset = 0x4, fixed_abs, tag = 'smem constant byte address 0x4 - core index']
  #allocation1 [shape = 'u32[144,128]{1,0:T(1,128)}', space=vmem, size = 0x12000, scoped, tag = 'internal scratch']
  #allocation2 [shape = 's32[1]{0:T(128)S(6)}', space=smem, size = 0x200, scoped, tag = 'scoped memory for forward.1']
  %s0 = inlined_call_operand.<no memory space> [shape: s32[1], index: 0, kind: input, shape index: {}]
  %s1 = inlined_call_operand.hbm [shape: f32[100,32], index: 1, kind: input, shape index: {}]
  %s2 = inlined_call_operand.vmem [shape: f32[1,32], index: 2, kind: input, shape index: {}]
  %s3 = inlined_call_operand.hbm [shape: f32[64,96], index: 3, kind: input, shape index: {}]
  %s4 = inlined_call_operand.vmem [shape: f32[3,128], index: 4, kind: input, shape index: {}]
  %s5 = inlined_call_operand.hbm [shape: f32[32,96], index: 5, kind: input, shape index: {}]
  %s6 = inlined_call_operand.vmem [shape: f32[1,128], index: 6, kind: output, shape index: {}]
  %s7 = sld [smem:[#allocation0]]
  $region46: #{forward.1} parent=0
    _
  %s9 = ssub.s32 1, %s7
  %s10 = scalar_select 0, %s9, %s7
  %11 = sst [smem:[#allocation2]] %s0
  $region1: #{forward.1} parent=0
    #allocation3 [shape = 'u8[53248]{0}', space=vmem, size = 0xd000, scoped, tag = 'input window, operand 1, single buffered']
    #allocation4 [shape = 's32[1]{0}', space=sflag, size = 0x4, scoped, tag = 'scoped memory for forward.1']
    #allocation5 [shape = 'u8[32768]{0}', space=vmem, size = 0x8000, scoped, tag = 'input window, operand 3, single buffered']
    #allocation6 [shape = 's32[1]{0}', space=sflag, size = 0x4, scoped, tag = 'scoped memory for forward.1']
    #allocation7 [shape = 'u8[16384]{0}', space=vmem, size = 0x4000, scoped, tag = 'input window, operand 5, single buffered']
    %12 = vsyncpa [#allocation4], 0
    %13 = vsyncpa [#allocation6], 0
    // Predicated region
    $region2: #{forward.1} parent=1 // pred_check
      _
    $region3: #{forward.1} parent=1 // pred_check_branch
      %15 = sbr.rel (0) target = $region5
    $region4: #{forward.1} parent=1 // pred_region
      _
    $region5: #{forward.1} parent=1 // pred_fallthru
      _
    // Predicated region
    $region6: #{forward.1} parent=1 // pred_check
      _
    $region7: #{forward.1} parent=1 // pred_check_branch
      %17 = sbr.rel (0) target = $region9
    $region8: #{forward.1} parent=1 // pred_region
      %s19 = ssub.s32 1664, 1664
      %20 = vsyncadd [#allocation4], %s19
      %s21 = sshll.u32 [#allocation3], 4
      %s22 = int_to_ptr.vmem [resolvable:$true] %s21
      %27 = dma.hbm_to_vmem [thread:$0]  %s1, 1664, %s22, [#allocation4], 128, 128, 8
    $region9: #{forward.1} parent=1 // pred_fallthru
      _
    // Predicated region
    $region10: #{forward.1} parent=1 // pred_check
      _
    $region11: #{forward.1} parent=1 // pred_check_branch
      %29 = sbr.rel (0) target = $region13
    $region12: #{forward.1} parent=1 // pred_region
      _
    $region13: #{forward.1} parent=1 // pred_fallthru
      _
    // Predicated region
    $region14: #{forward.1} parent=1 // pred_check
      _
    $region15: #{forward.1} parent=1 // pred_check_branch
      %31 = sbr.rel (0) target = $region17
    $region16: #{forward.1} parent=1 // pred_region
      %s33 = ssub.s32 1024, 1024
      %34 = vsyncadd [#allocation6], %s33
      %s35 = sshll.u32 [#allocation5], 4
      %s36 = int_to_ptr.vmem [resolvable:$true] %s35
      %41 = dma.hbm_to_vmem [thread:$0]  %s3, 1024, %s36, [#allocation6], 128, 128, 8
    $region17: #{forward.1} parent=1 // pred_fallthru
      _
    // Predicated region
    $region18: #{forward.1} parent=1 // pred_check
      _
    $region19: #{forward.1} parent=1 // pred_check_branch
      %43 = sbr.rel (0) target = $region21
    $region20: #{forward.1} parent=1 // pred_region
      _
    $region21: #{forward.1} parent=1 // pred_fallthru
      _
    // Predicated region
    $region22: #{forward.1} parent=1 // pred_check
      _
    $region23: #{forward.1} parent=1 // pred_check_branch
      %45 = sbr.rel (0) target = $region25
    $region24: #{forward.1} parent=1 // pred_region
      %s47 = ssub.s32 512, 512
      %48 = vsyncadd [#allocation6], %s47
      %s49 = sshll.u32 [#allocation7], 4
      %s50 = int_to_ptr.vmem [resolvable:$true] %s49
      %55 = dma.hbm_to_vmem [thread:$0]  %s5, 512, %s50, [#allocation6], 128, 128, 8
    $region25: #{forward.1} parent=1 // pred_fallthru
      _
    // Predicated region
    $region26: #{forward.1} parent=1 // pred_check
      _
    $region27: #{forward.1} parent=1 // pred_check_branch
      %57 = sbr.rel (0) target = $region29
    $region28: #{forward.1} parent=1 // pred_region
      %58 = dma.done [#allocation4], 1664
    $region29: #{forward.1} parent=1 // pred_fallthru
      _
    // Predicated region
    $region30: #{forward.1} parent=1 // pred_check
      _
    $region31: #{forward.1} parent=1 // pred_check_branch
      %60 = sbr.rel (0) target = $region33
    $region32: #{forward.1} parent=1 // pred_region
      %61 = dma.done [#allocation6], 1024
    $region33: #{forward.1} parent=1 // pred_fallthru
      _
    // Predicated region
    $region34: #{forward.1} parent=1 // pred_check
      _
    $region35: #{forward.1} parent=1 // pred_check_branch
      %63 = sbr.rel (0) target = $region37
    $region36: #{forward.1} parent=1 // pred_region
      %64 = dma.done [#allocation6], 512
    $region37: #{forward.1} parent=1 // pred_fallthru
      _
    %s65 = sld [smem:[#allocation2]]
    %s66 = scalar_lea.vmem [#allocation3], %s65
    %v67 = vld [vmem:[%s66] sm:$0x1]
    %v68 = vld [vmem:[%s2] sm:$0x1]
    %v69 = vld [vmem:[#allocation5] sm:$0xff]
    %v70 = vld [vmem:[#allocation5 + $0x8] sm:$0xff]
    %v71 = vld [vmem:[#allocation5 + $0x10] sm:$0xff]
    %v72 = vld [vmem:[#allocation5 + $0x18] sm:$0xff]
    %v73 = vld [vmem:[%s4] sm:$0x1]
    %vm74 = vcmask 261120
    %v76 = vsel %vm74, %v67, 0
    %78 = vmatprep.subr.mxu0 0.0
    %79 = vmatpush1.msra.mxu0 %v69
    %80 = vmatprep.subr.mxu0 0.0
    %81 = vmatpush1.msra.mxu0 %v70
    %82 = vmatprep.subr.mxu0 0.0
    %83 = vmatpush1.msra.mxu0 %v71
    %84 = vmatprep.subr.mxu0 0.0
    %85 = vmatpush1.msra.mxu0 %v72
    %86 = vmatprep.subr.mxu0 0.0
    %87 = vmatpush1.msra.mxu0 0.0
    %88 = vmatprep.subr.mxu0 0.0
    %89 = vmatpush1.msra.mxu0 0.0
    %90 = vmatprep.subr.mxu0 0.0
    %91 = vmatpush1.msra.mxu0 0.0
    %92 = vmatprep.subr.mxu0 0.0
    %93 = vmatpush1.msra.mxu0 0.0
    %94 = vmatprep.subr.mxu0 0.0
    %95 = vmatpush1.msra.mxu0 0.0
    %96 = vmatprep.subr.mxu0 0.0
    %97 = vmatpush1.msra.mxu0 0.0
    %98 = vmatprep.subr.mxu0 0.0
    %99 = vmatpush1.msra.mxu0 0.0
    %100 = vmatprep.subr.mxu0 0.0
    %101 = vmatpush1.msra.mxu0 0.0
    %102 = vmatprep.subr.mxu0 0.0
    %103 = vmatpush1.msra.mxu0 0.0
    %104 = vmatprep.subr.mxu0 0.0
    %105 = vmatpush1.msra.mxu0 0.0
    %106 = vmatprep.subr.mxu0 0.0
    %107 = vmatpush1.msra.mxu0 0.0
    %108 = vmatprep.subr.mxu0 0.0
    %109 = vmatpush1.msra.mxu0 0.0
    %110 = vmatprep.subr.mxu0 0.0
    %111 = vmatpush1.msra.mxu0 0.0
    %112 = vmatprep.subr.mxu0 0.0
    %113 = vmatpush1.msra.mxu0 0.0
    %114 = vmatprep.subr.mxu0 0.0
    %115 = vmatpush1.msra.mxu0 0.0
    %116 = vmatprep.subr.mxu0 0.0
    %117 = vmatpush1.msra.mxu0 0.0
    %118 = vmatprep.subr.mxu0 0.0
    %119 = vmatpush1.msra.mxu0 0.0
    %120 = vmatprep.subr.mxu0 0.0
    %121 = vmatpush1.msra.mxu0 0.0
    %122 = vmatprep.subr.mxu0 0.0
    %123 = vmatpush1.msra.mxu0 0.0
    %124 = vmatprep.subr.mxu0 0.0
    %125 = vmatpush1.msra.mxu0 0.0
    %126 = vmatprep.subr.mxu0 0.0
    %127 = vmatpush1.msra.mxu0 0.0
    %128 = vmatprep.subr.mxu0 0.0
    %129 = vmatpush1.msra.mxu0 0.0
    %130 = vmatprep.subr.mxu0 0.0
    %131 = vmatpush1.msra.mxu0 0.0
    %132 = vmatprep.subr.mxu0 0.0
    %133 = vmatpush1.msra.mxu0 0.0
    %134 = vmatprep.subr.mxu0 0.0
    %135 = vmatpush1.msra.mxu0 0.0
    %136 = vmatprep.subr.mxu0 0.0
    %137 = vmatpush1.msra.mxu0 0.0
    %138 = vmatprep.subr.mxu0 0.0
    %139 = vmatpush1.msra.mxu0 0.0
    %140 = vmatprep.subr.mxu0 0.0
    %141 = vmatpush1.msra.mxu0 0.0
    %142 = vmatprep.mubr.f32.mxu0 0.0
    %143 = vmatmul.mubr.f32.gmra.mrb[0].mxu0 %v76
    %v144 = vpop.f32.mrb[0].mxu0
    %v145 = vadd.f32 %v73, %v144
    %v146 = vpop.f32.mrb[0].mxu0
    %147 = vdwg.mxu0
    %v148 = vld [vmem:[#allocation5 + $0x20] sm:$0xff]
    %v149 = vld [vmem:[#allocation5 + $0x28] sm:$0xff]
    %v150 = vld [vmem:[#allocation5 + $0x30] sm:$0xff]
    %v151 = vld [vmem:[#allocation5 + $0x38] sm:$0xff]
    %v152 = vld [vmem:[%s4 + $0x1] sm:$0x1]
    %v154 = vsel %vm74, %v68, 0
    %156 = vmatprep.subr.mxu0 0.0
    %157 = vmatpush1.msra.mxu0 %v148
    %158 = vmatprep.subr.mxu0 0.0
    %159 = vmatpush1.msra.mxu0 %v149
    %160 = vmatprep.subr.mxu0 0.0
    %161 = vmatpush1.msra.mxu0 %v150
    %162 = vmatprep.subr.mxu0 0.0
    %163 = vmatpush1.msra.mxu0 %v151
    %164 = vmatprep.subr.mxu0 0.0
    %165 = vmatpush1.msra.mxu0 0.0
    %166 = vmatprep.subr.mxu0 0.0
    %167 = vmatpush1.msra.mxu0 0.0
    %168 = vmatprep.subr.mxu0 0.0
    %169 = vmatpush1.msra.mxu0 0.0
    %170 = vmatprep.subr.mxu0 0.0
    %171 = vmatpush1.msra.mxu0 0.0
    %172 = vmatprep.subr.mxu0 0.0
    %173 = vmatpush1.msra.mxu0 0.0
    %174 = vmatprep.subr.mxu0 0.0
    %175 = vmatpush1.msra.mxu0 0.0
    %176 = vmatprep.subr.mxu0 0.0
    %177 = vmatpush1.msra.mxu0 0.0
    %178 = vmatprep.subr.mxu0 0.0
    %179 = vmatpush1.msra.mxu0 0.0
    %180 = vmatprep.subr.mxu0 0.0
    %181 = vmatpush1.msra.mxu0 0.0
    %182 = vmatprep.subr.mxu0 0.0
    %183 = vmatpush1.msra.mxu0 0.0
    %184 = vmatprep.subr.mxu0 0.0
    %185 = vmatpush1.msra.mxu0 0.0
    %186 = vmatprep.subr.mxu0 0.0
    %187 = vmatpush1.msra.mxu0 0.0
    %188 = vmatprep.subr.mxu0 0.0
    %189 = vmatpush1.msra.mxu0 0.0
    %190 = vmatprep.subr.mxu0 0.0
    %191 = vmatpush1.msra.mxu0 0.0
    %192 = vmatprep.subr.mxu0 0.0
    %193 = vmatpush1.msra.mxu0 0.0
    %194 = vmatprep.subr.mxu0 0.0
    %195 = vmatpush1.msra.mxu0 0.0
    %196 = vmatprep.subr.mxu0 0.0
    %197 = vmatpush1.msra.mxu0 0.0
    %198 = vmatprep.subr.mxu0 0.0
    %199 = vmatpush1.msra.mxu0 0.0
    %200 = vmatprep.subr.mxu0 0.0
    %201 = vmatpush1.msra.mxu0 0.0
    %202 = vmatprep.subr.mxu0 0.0
    %203 = vmatpush1.msra.mxu0 0.0
    %204 = vmatprep.subr.mxu0 0.0
    %205 = vmatpush1.msra.mxu0 0.0
    %206 = vmatprep.subr.mxu0 0.0
    %207 = vmatpush1.msra.mxu0 0.0
    %208 = vmatprep.subr.mxu0 0.0
    %209 = vmatpush1.msra.mxu0 0.0
    %210 = vmatprep.subr.mxu0 0.0
    %211 = vmatpush1.msra.mxu0 0.0
    %212 = vmatprep.subr.mxu0 0.0
    %213 = vmatpush1.msra.mxu0 0.0
    %214 = vmatprep.subr.mxu0 0.0
    %215 = vmatpush1.msra.mxu0 0.0
    %216 = vmatprep.subr.mxu0 0.0
    %217 = vmatpush1.msra.mxu0 0.0
    %218 = vmatprep.subr.mxu0 0.0
    %219 = vmatpush1.msra.mxu0 0.0
    %220 = vmatprep.mubr.f32.mxu0 0.0
    %221 = vmatmul.mubr.f32.gmra.mrb[0].mxu0 %v154
    %v222 = vpop.f32.mrb[0].mxu0
    %v223 = vadd.f32 %v152, %v222
    %v224 = vpop.f32.mrb[0].mxu0
    %225 = vdwg.mxu0
    %v226 = vadd.f32 %v145, %v223
    %v227 = vxor.u32 %v226, 2147483648
    %v228 = vmul.f32 %v227, 1.442695
    %v229 = vpow.pop %v228
    %v230 = vadd.f32 %v229, 1.0
    %v231 = vrcp.pop %v230
    %v232 = vmul.f32 1.0, %v231
    %234 = vrot.lane.b32.xlu0 %v223, 64
    %v235 = vpop.permute.xlu0 %234
    %v237 = vmul.f32 %v232, %v235
    %239 = vrot.lane.b32.xlu0 %v237, 64
    %v240 = vpop.permute.xlu0 %239
    %v242 = vadd.f32 %v145, %v240
    %v243 = vtanh.pop %v242
    %v244 = vsub.f32 1.0, %v232
    %246 = vrot.lane.b32.xlu0 %v243, 96
    %v247 = vpop.permute.xlu0 %246
    %v249 = vmul.f32 %v244, %v247
    %v250 = vlaneseq
    %v251 = vshrl.u32 %v250, 7
    %v252 = vsub.s32 0, %v251
    %v253 = vrot.slane %v68, %v252
    %254 = vrot.lane.b32.xlu0 %v253, 32
    %v255 = vpop.permute.xlu0 %254
    %v257 = vmul.f32 %v232, %v255
    %v258 = vadd.f32 %v249, %v257
    %v259 = vld [vmem:[#allocation7] sm:$0xff]
    %v260 = vld [vmem:[#allocation7 + $0x8] sm:$0xff]
    %v261 = vld [vmem:[#allocation7 + $0x10] sm:$0xff]
    %v262 = vld [vmem:[#allocation7 + $0x18] sm:$0xff]
    %v263 = vld [vmem:[%s4 + $0x2] sm:$0x1]
    %265 = vrot.lane.b32.xlu0 %v258, 96
    %v266 = vpop.permute.xlu0 %265
    %v267 = vsel %vm74, %v266, 0
    %269 = vmatprep.subr.mxu0 0.0
    %270 = vmatpush1.msra.mxu0 %v259
    %271 = vmatprep.subr.mxu0 0.0
    %272 = vmatpush1.msra.mxu0 %v260
    %273 = vmatprep.subr.mxu0 0.0
    %274 = vmatpush1.msra.mxu0 %v261
    %275 = vmatprep.subr.mxu0 0.0
    %276 = vmatpush1.msra.mxu0 %v262
    %277 = vmatprep.subr.mxu0 0.0
    %278 = vmatpush1.msra.mxu0 0.0
    %279 = vmatprep.subr.mxu0 0.0
    %280 = vmatpush1.msra.mxu0 0.0
    %281 = vmatprep.subr.mxu0 0.0
    %282 = vmatpush1.msra.mxu0 0.0
    %283 = vmatprep.subr.mxu0 0.0
    %284 = vmatpush1.msra.mxu0 0.0
    %285 = vmatprep.subr.mxu0 0.0
    %286 = vmatpush1.msra.mxu0 0.0
    %287 = vmatprep.subr.mxu0 0.0
    %288 = vmatpush1.msra.mxu0 0.0
    %289 = vmatprep.subr.mxu0 0.0
    %290 = vmatpush1.msra.mxu0 0.0
    %291 = vmatprep.subr.mxu0 0.0
    %292 = vmatpush1.msra.mxu0 0.0
    %293 = vmatprep.subr.mxu0 0.0
    %294 = vmatpush1.msra.mxu0 0.0
    %295 = vmatprep.subr.mxu0 0.0
    %296 = vmatpush1.msra.mxu0 0.0
    %297 = vmatprep.subr.mxu0 0.0
    %298 = vmatpush1.msra.mxu0 0.0
    %299 = vmatprep.subr.mxu0 0.0
    %300 = vmatpush1.msra.mxu0 0.0
    %301 = vmatprep.subr.mxu0 0.0
    %302 = vmatpush1.msra.mxu0 0.0
    %303 = vmatprep.subr.mxu0 0.0
    %304 = vmatpush1.msra.mxu0 0.0
    %305 = vmatprep.subr.mxu0 0.0
    %306 = vmatpush1.msra.mxu0 0.0
    %307 = vmatprep.subr.mxu0 0.0
    %308 = vmatpush1.msra.mxu0 0.0
    %309 = vmatprep.subr.mxu0 0.0
    %310 = vmatpush1.msra.mxu0 0.0
    %311 = vmatprep.subr.mxu0 0.0
    %312 = vmatpush1.msra.mxu0 0.0
    %313 = vmatprep.subr.mxu0 0.0
    %314 = vmatpush1.msra.mxu0 0.0
    %315 = vmatprep.subr.mxu0 0.0
    %316 = vmatpush1.msra.mxu0 0.0
    %317 = vmatprep.subr.mxu0 0.0
    %318 = vmatpush1.msra.mxu0 0.0
    %319 = vmatprep.subr.mxu0 0.0
    %320 = vmatpush1.msra.mxu0 0.0
    %321 = vmatprep.subr.mxu0 0.0
    %322 = vmatpush1.msra.mxu0 0.0
    %323 = vmatprep.subr.mxu0 0.0
    %324 = vmatpush1.msra.mxu0 0.0
    %325 = vmatprep.subr.mxu0 0.0
    %326 = vmatpush1.msra.mxu0 0.0
    %327 = vmatprep.subr.mxu0 0.0
    %328 = vmatpush1.msra.mxu0 0.0
    %329 = vmatprep.subr.mxu0 0.0
    %330 = vmatpush1.msra.mxu0 0.0
    %331 = vmatprep.subr.mxu0 0.0
    %332 = vmatpush1.msra.mxu0 0.0
    %333 = vmatprep.mubr.f32.mxu0 0.0
    %334 = vmatmul.mubr.f32.gmra.mrb[0].mxu0 %v267
    %v335 = vpop.f32.mrb[0].mxu0
    %v336 = vadd.f32 %v263, %v335
    %v337 = vpop.f32.mrb[0].mxu0
    %338 = vdwg.mxu0
    %vm340 = vcmask 253952
    %341 = vst.msk [vmem:[%s6] sm:$0x1] %vm340, %v266
    %343 = vrot.lane.b32.xlu0 %v336, 32
    %v344 = vpop.permute.xlu0 %343
    %vm346 = vcmask 1040640
    %347 = vst.msk [vmem:[%s6] sm:$0x1] %vm346, %v344
    // Predicated region
    $region38: #{forward.1} parent=1 // pred_check
      _
    $region39: #{forward.1} parent=1 // pred_check_branch
      %349 = sbr.rel (0) target = $region41
    $region40: #{forward.1} parent=1 // pred_region
      _
    $region41: #{forward.1} parent=1 // pred_fallthru
      _
    // Predicated region
    $region42: #{forward.1} parent=1 // pred_check
      _
    $region43: #{forward.1} parent=1 // pred_check_branch
      %351 = sbr.rel (0) target = $region45
    $region44: #{forward.1} parent=1 // pred_region
      _
    $region45: #{forward.1} parent=1 // pred_fallthru
      _
    %352 = vsyncpa [#allocation4], 1
    %353 = vsyncpa [#allocation6], 1

</llo_original>
